<compile_context>
chip_gen: v7x
topology: tpu7x:2x2x1
jax: 0.10.0
libtpu: 0.0.40
codegen_flags: <defaults>
</compile_context>

<pallas_src>
import numpy as np
import jax
import jax.numpy as jnp
from jax.experimental import pallas as pl
from jax.experimental.pallas import tpu as pltpu

N_VERTS = 778
N_JOINTS = 21
FIX_IDXS = (0, 4, 8, 12, 16, 20)   # rows reset to J_regressor every forward
_MAX_TM = 2048                     # row tile cap (x double-buffer ~12.8 MiB)


def _mano_adaptor_kernel(w_ref, x_ref, y_ref):
    # w_ref: (21, 778)   fixed adaptor weight (resident, constant index map)
    # x_ref: (TM, 778)   row tile of (m_pad, 778), vertices on the lane axis
    # y_ref: (21, TM)    output tile — TM on the lane axis: full-width MXU
    #                    passes and an unmasked lane-dense store.
    y_ref[...] = jax.lax.dot_general(
        w_ref[...], x_ref[...],
        dimension_numbers=(((1,), (1,)), ((), ())),  # contract the 778 dim
        preferred_element_type=jnp.float32)


@jax.jit
def mano_adaptor_forward(inp, weight, j_regressor):
    """inp: (B, 778, 3) f32; weight, j_regressor: (21, 778) f32.

    Returns (out, diff) with out: (B, 3, 21), diff: (21, 778)."""
    B = inp.shape[0]
    M = B * 3

    # Hoisted one-shot work (plain XLA, fused inside this jit):
    #   rows FIX_IDXS of the weight are reset to J_regressor, and the second
    #   output is the resulting difference.
    fix_idxs = jnp.asarray(list(FIX_IDXS), dtype=jnp.int32)
    w_fixed = weight.at[fix_idxs].set(j_regressor[fix_idxs])
    diff = w_fixed - j_regressor

    # PyTorch's inp.transpose(2, 1) -> (B, 3, 778); flatten batch*coords to
    # rows so the 778 vertices sit on the lane axis (lane-dense matmul input).
    # This transpose + pad is a single fused XLA copy feeding the kernel.
    x = jnp.transpose(inp, (0, 2, 1)).reshape(M, N_VERTS)

    # Row tile: multiple of 128 (lane quantum for the (21, TM) output block,
    # also satisfies the x sublane constraint), capped at _MAX_TM.  Pad the
    # row count so the grid divides exactly (padded rows are zeros).
    tm = min(_MAX_TM, ((M + 127) // 128) * 128)
    m_pad = ((M + tm - 1) // tm) * tm
    if m_pad != M:
        x = jnp.pad(x, ((0, m_pad - M), (0, 0)))
    n_tiles = m_pad // tm

    x_bytes = m_pad * N_VERTS * 4
    w_bytes = N_JOINTS * N_VERTS * 4
    y_bytes = N_JOINTS * m_pad * 4

    y_t = pl.pallas_call(
        _mano_adaptor_kernel,
        out_shape=jax.ShapeDtypeStruct((N_JOINTS, m_pad), jnp.float32),
        grid_spec=pltpu.PrefetchScalarGridSpec(
            num_scalar_prefetch=0,
            grid=(n_tiles,),
            in_specs=[
                pl.BlockSpec((N_JOINTS, N_VERTS), lambda i: (0, 0)),  # w_fixed
                pl.BlockSpec((tm, N_VERTS), lambda i: (i, 0)),        # x rows
            ],
            out_specs=pl.BlockSpec((N_JOINTS, tm), lambda i: (0, i)),  # y cols
        ),
        compiler_params=pltpu.CompilerParams(
            dimension_semantics=("parallel",)),
        cost_estimate=pl.CostEstimate(
            flops=2 * m_pad * N_VERTS * N_JOINTS,
            transcendentals=0,
            bytes_accessed=x_bytes + w_bytes + y_bytes),
    )(w_fixed, x)

    # (21, M) -> (M, 21) -> (B, 3, 21): tiny transpose, stays inside the jit.
    out = y_t[:, :M].T.reshape(B, 3, N_JOINTS)
    return out, diff


def build_j_regressor(key):
    """Deterministic synthetic stand-in for ManoLayer's th_J_regressor path."""
    base = jax.random.uniform(key, (16, N_VERTS), dtype=jnp.float32)
    base = base / jnp.sum(base, axis=1, keepdims=True)

    tip_reg = jnp.zeros((5, N_VERTS), dtype=jnp.float32)
    tip_idx = [745, 317, 444, 556, 673]
    for i, v in enumerate(tip_idx):
        tip_reg = tip_reg.at[i, v].set(1.0)

    full = jnp.concatenate([base, tip_reg], axis=0)  # (21, 778)
    order = [0, 13, 14, 15, 16, 1, 2, 3, 17, 4, 5, 6, 18,
             10, 11, 12, 19, 7, 8, 9, 20]
    return full[jnp.asarray(order)]


if __name__ == "__main__":
    key = jax.random.PRNGKey(0)
    k_reg, k_pert, k_inp = jax.random.split(key, 3)

    j_regressor = build_j_regressor(k_reg)                       # (21, 778)
    # adaptor.weight is initialized to J_regressor; perturb to mimic training
    # so the fix_idxs row-reset and the (weight - J_regressor) output are
    # exercised non-trivially.
    weight = j_regressor + 1e-2 * jax.random.normal(
        k_pert, (N_JOINTS, N_VERTS), dtype=jnp.float32)

    B = 2
    inp = jax.random.normal(k_inp, (B, N_VERTS, 3), dtype=jnp.float32)

    out, diff = mano_adaptor_forward(inp, weight, j_regressor)
    jax.block_until_ready((out, diff))

    # reference check in plain JAX (mirrors the PyTorch forward)
    fix_idxs = jnp.asarray(list(FIX_IDXS))
    w_fixed_ref = weight.at[fix_idxs].set(j_regressor[fix_idxs])
    out_ref = jnp.einsum("bvc,jv->bcj", inp, w_fixed_ref)
    diff_ref = w_fixed_ref - j_regressor
    assert out.shape == (B, 3, N_JOINTS) and diff.shape == (N_JOINTS, N_VERTS)
    np.testing.assert_allclose(np.asarray(out), np.asarray(out_ref),
                               rtol=1e-5, atol=1e-5)
    np.testing.assert_allclose(np.asarray(diff), np.asarray(diff_ref),
                               rtol=1e-6, atol=1e-6)

    print("KERNEL_OK")
</pallas_src>

<mosaic_0001>
module attributes {stable_mosaic.version = 11 : i64} {
  func.func @_mano_adaptor_kernel(%arg0: i32, %arg1: memref<21x778xf32, #tpu.memory_space<vmem>>, %arg2: memref<128x778xf32, #tpu.memory_space<vmem>>, %arg3: memref<21x128xf32, #tpu.memory_space<vmem>>) attributes {dimension_semantics = [#tpu.dimension_semantics<parallel>], iteration_bounds = array<i64: 1>, scalar_prefetch = 0 : i64, scratch_operands = 0 : i64, tpu.core_type = #tpu.core_type<tc>, window_params = [{pipeline_mode = #tpu.pipeline_mode<synchronous>, transform_indices = @transform_0, window_bounds = array<i64: 21, 778>}, {transform_indices = @transform_1, window_bounds = array<i64: 128, 778>}, {transform_indices = @transform_2, window_bounds = array<i64: 21, 128>}]} {
    %c0 = arith.constant 0 : index
    %c0_0 = arith.constant 0 : index
    %0 = vector.load %arg1[%c0, %c0_0] : memref<21x778xf32, #tpu.memory_space<vmem>>, vector<21x778xf32>
    %c0_1 = arith.constant 0 : index
    %c0_2 = arith.constant 0 : index
    %1 = vector.load %arg2[%c0_1, %c0_2] : memref<128x778xf32, #tpu.memory_space<vmem>>, vector<128x778xf32>
    %cst = arith.constant dense<0.000000e+00> : vector<21x128xf32>
    %2 = tpu.matmul %0, %1, %cst {dimension_numbers = #tpu.dot_dimension_numbers<[1], [1], [0], [0], [0, 0, 1, 0], [], []>} : vector<21x778xf32>, vector<128x778xf32>, vector<21x128xf32> -> vector<21x128xf32>
    %c0_3 = arith.constant 0 : index
    %c0_4 = arith.constant 0 : index
    %3 = vector.load %arg3[%c0_3, %c0_4] : memref<21x128xf32, #tpu.memory_space<vmem>>, vector<21x128xf32>
    tpu.vector_store %arg3[%c0_3, %c0_4], %2 {strides = array<i32>} : memref<21x128xf32, #tpu.memory_space<vmem>>, vector<21x128xf32>,
    return
  }
  func.func @transform_0(%arg0: i32) -> (i32, i32) {
    %c0_i32 = arith.constant 0 : i32
    %c0_i32_0 = arith.constant 0 : i32
    %c0_i32_1 = arith.constant 0 : i32
    return %c0_i32, %c0_i32_0 : i32, i32
  }
  func.func @transform_1(%arg0: i32) -> (i32, i32) {
    %c0_i32 = arith.constant 0 : i32
    %c0_i32_0 = arith.constant 0 : i32
    return %arg0, %c0_i32 : i32, i32
  }
  func.func @transform_2(%arg0: i32) -> (i32, i32) {
    %c0_i32 = arith.constant 0 : i32
    %c0_i32_0 = arith.constant 0 : i32
    return %c0_i32, %arg0 : i32, i32
  }
}

</mosaic_0001>

<llo_original>
// kernel: sub.1
$region0: #{sub.1}
  #allocation2 [shape = 's32[1]{0}', space=sflag, size = 0x4, scoped, tag = 'scoped memory for sub.1']
  %s0 = inlined_call_operand.vmem [shape: f32[21,778], index: 0, kind: input, shape index: {}]
  %s1 = inlined_call_operand.vmem [shape: f32[21,778], index: 1, kind: input, shape index: {}]
  %s2 = inlined_call_operand.hbm [shape: f32[21,778], index: 2, kind: output, shape index: {}]
  $region1: #{sub.1} parent=0
    #allocation0 [shape = 'u8[86016]{0}', space=vmem, size = 0x15000, scoped, tag = 'operand span for operand 2']
    #allocation1 [shape = 's32[1]{0}', space=sflag, size = 0x4, scoped, tag = 'scoped memory for sub.1']
    %3 = vsyncpa [#allocation1], 0
    %v4 = vld [vmem:[%s0] sm:$0xff]
    %v5 = vld [vmem:[%s1] sm:$0xff]
    %6 = xla_tuple %v4, %v5
    %7 = xla_tuple %6
    %v8 = vsub.f32 %v4, %v5
    %9 = xla_tuple %v8
    %10 = vst [vmem:[#allocation0] sm:$0xff] %v8
    %s11 = scalar_lea.vmem %s0, 56
    %v12 = vld [vmem:[%s11] sm:$0xff]
    %s13 = scalar_lea.vmem %s1, 56
    %v14 = vld [vmem:[%s13] sm:$0xff]
    %15 = xla_tuple %v12, %v14
    %16 = xla_tuple %15
    %v17 = vsub.f32 %v12, %v14
    %18 = xla_tuple %v17
    %s19 = scalar_lea.vmem [#allocation0], 56
    %20 = vst [vmem:[%s19] sm:$0xff] %v17
    %s21 = scalar_lea.vmem %s0, 112
    %v22 = vld [vmem:[%s21] sm:$0xff]
    %s23 = scalar_lea.vmem %s1, 112
    %v24 = vld [vmem:[%s23] sm:$0xff]
    %25 = xla_tuple %v22, %v24
    %26 = xla_tuple %25
    %v27 = vsub.f32 %v22, %v24
    %28 = xla_tuple %v27
    %s29 = scalar_lea.vmem [#allocation0], 112
    %30 = vst [vmem:[%s29] sm:$0xff] %v27
    %s31 = scalar_lea.vmem %s0, 8
    %v32 = vld [vmem:[%s31] sm:$0xff]
    %s33 = scalar_lea.vmem %s1, 8
    %v34 = vld [vmem:[%s33] sm:$0xff]
    %35 = xla_tuple %v32, %v34
    %36 = xla_tuple %35
    %v37 = vsub.f32 %v32, %v34
    %38 = xla_tuple %v37
    %s39 = scalar_lea.vmem [#allocation0], 8
    %40 = vst [vmem:[%s39] sm:$0xff] %v37
    %s41 = scalar_lea.vmem %s0, 64
    %v42 = vld [vmem:[%s41] sm:$0xff]
    %s43 = scalar_lea.vmem %s1, 64
    %v44 = vld [vmem:[%s43] sm:$0xff]
    %45 = xla_tuple %v42, %v44
    %46 = xla_tuple %45
    %v47 = vsub.f32 %v42, %v44
    %48 = xla_tuple %v47
    %s49 = scalar_lea.vmem [#allocation0], 64
    %50 = vst [vmem:[%s49] sm:$0xff] %v47
    %s51 = scalar_lea.vmem %s0, 120
    %v52 = vld [vmem:[%s51] sm:$0xff]
    %s53 = scalar_lea.vmem %s1, 120
    %v54 = vld [vmem:[%s53] sm:$0xff]
    %55 = xla_tuple %v52, %v54
    %56 = xla_tuple %55
    %v57 = vsub.f32 %v52, %v54
    %58 = xla_tuple %v57
    %s59 = scalar_lea.vmem [#allocation0], 120
    %60 = vst [vmem:[%s59] sm:$0xff] %v57
    %s61 = scalar_lea.vmem %s0, 16
    %v62 = vld [vmem:[%s61] sm:$0xff]
    %s63 = scalar_lea.vmem %s1, 16
    %v64 = vld [vmem:[%s63] sm:$0xff]
    %65 = xla_tuple %v62, %v64
    %66 = xla_tuple %65
    %v67 = vsub.f32 %v62, %v64
    %68 = xla_tuple %v67
    %s69 = scalar_lea.vmem [#allocation0], 16
    %70 = vst [vmem:[%s69] sm:$0xff] %v67
    %s71 = scalar_lea.vmem %s0, 72
    %v72 = vld [vmem:[%s71] sm:$0xff]
    %s73 = scalar_lea.vmem %s1, 72
    %v74 = vld [vmem:[%s73] sm:$0xff]
    %75 = xla_tuple %v72, %v74
    %76 = xla_tuple %75
    %v77 = vsub.f32 %v72, %v74
    %78 = xla_tuple %v77
    %s79 = scalar_lea.vmem [#allocation0], 72
    %80 = vst [vmem:[%s79] sm:$0xff] %v77
    %s81 = scalar_lea.vmem %s0, 128
    %v82 = vld [vmem:[%s81] sm:$0xff]
    %s83 = scalar_lea.vmem %s1, 128
    %v84 = vld [vmem:[%s83] sm:$0xff]
    %85 = xla_tuple %v82, %v84
    %86 = xla_tuple %85
    %v87 = vsub.f32 %v82, %v84
    %88 = xla_tuple %v87
    %s89 = scalar_lea.vmem [#allocation0], 128
    %90 = vst [vmem:[%s89] sm:$0xff] %v87
    %s91 = scalar_lea.vmem %s0, 24
    %v92 = vld [vmem:[%s91] sm:$0xff]
    %s93 = scalar_lea.vmem %s1, 24
    %v94 = vld [vmem:[%s93] sm:$0xff]
    %95 = xla_tuple %v92, %v94
    %96 = xla_tuple %95
    %v97 = vsub.f32 %v92, %v94
    %98 = xla_tuple %v97
    %s99 = scalar_lea.vmem [#allocation0], 24
    %100 = vst [vmem:[%s99] sm:$0xff] %v97
    %s101 = scalar_lea.vmem %s0, 80
    %v102 = vld [vmem:[%s101] sm:$0xff]
    %s103 = scalar_lea.vmem %s1, 80
    %v104 = vld [vmem:[%s103] sm:$0xff]
    %105 = xla_tuple %v102, %v104
    %106 = xla_tuple %105
    %v107 = vsub.f32 %v102, %v104
    %108 = xla_tuple %v107
    %s109 = scalar_lea.vmem [#allocation0], 80
    %110 = vst [vmem:[%s109] sm:$0xff] %v107
    %s111 = scalar_lea.vmem %s0, 136
    %v112 = vld [vmem:[%s111] sm:$0xff]
    %s113 = scalar_lea.vmem %s1, 136
    %v114 = vld [vmem:[%s113] sm:$0xff]
    %115 = xla_tuple %v112, %v114
    %116 = xla_tuple %115
    %v117 = vsub.f32 %v112, %v114
    %118 = xla_tuple %v117
    %s119 = scalar_lea.vmem [#allocation0], 136
    %120 = vst [vmem:[%s119] sm:$0xff] %v117
    %s121 = scalar_lea.vmem %s0, 32
    %v122 = vld [vmem:[%s121] sm:$0xff]
    %s123 = scalar_lea.vmem %s1, 32
    %v124 = vld [vmem:[%s123] sm:$0xff]
    %125 = xla_tuple %v122, %v124
    %126 = xla_tuple %125
    %v127 = vsub.f32 %v122, %v124
    %128 = xla_tuple %v127
    %s129 = scalar_lea.vmem [#allocation0], 32
    %130 = vst [vmem:[%s129] sm:$0xff] %v127
    %s131 = scalar_lea.vmem %s0, 88
    %v132 = vld [vmem:[%s131] sm:$0xff]
    %s133 = scalar_lea.vmem %s1, 88
    %v134 = vld [vmem:[%s133] sm:$0xff]
    %135 = xla_tuple %v132, %v134
    %136 = xla_tuple %135
    %v137 = vsub.f32 %v132, %v134
    %138 = xla_tuple %v137
    %s139 = scalar_lea.vmem [#allocation0], 88
    %140 = vst [vmem:[%s139] sm:$0xff] %v137
    %s141 = scalar_lea.vmem %s0, 144
    %v142 = vld [vmem:[%s141] sm:$0xff]
    %s143 = scalar_lea.vmem %s1, 144
    %v144 = vld [vmem:[%s143] sm:$0xff]
    %145 = xla_tuple %v142, %v144
    %146 = xla_tuple %145
    %v147 = vsub.f32 %v142, %v144
    %148 = xla_tuple %v147
    %s149 = scalar_lea.vmem [#allocation0], 144
    %150 = vst [vmem:[%s149] sm:$0xff] %v147
    %s151 = scalar_lea.vmem %s0, 40
    %v152 = vld [vmem:[%s151] sm:$0xff]
    %s153 = scalar_lea.vmem %s1, 40
    %v154 = vld [vmem:[%s153] sm:$0xff]
    %155 = xla_tuple %v152, %v154
    %156 = xla_tuple %155
    %v157 = vsub.f32 %v152, %v154
    %158 = xla_tuple %v157
    %s159 = scalar_lea.vmem [#allocation0], 40
    %160 = vst [vmem:[%s159] sm:$0xff] %v157
    %s161 = scalar_lea.vmem %s0, 96
    %v162 = vld [vmem:[%s161] sm:$0xff]
    %s163 = scalar_lea.vmem %s1, 96
    %v164 = vld [vmem:[%s163] sm:$0xff]
    %165 = xla_tuple %v162, %v164
    %166 = xla_tuple %165
    %v167 = vsub.f32 %v162, %v164
    %168 = xla_tuple %v167
    %s169 = scalar_lea.vmem [#allocation0], 96
    %170 = vst [vmem:[%s169] sm:$0xff] %v167
    %s171 = scalar_lea.vmem %s0, 152
    %v172 = vld [vmem:[%s171] sm:$0xff]
    %s173 = scalar_lea.vmem %s1, 152
    %v174 = vld [vmem:[%s173] sm:$0xff]
    %175 = xla_tuple %v172, %v174
    %176 = xla_tuple %175
    %v177 = vsub.f32 %v172, %v174
    %178 = xla_tuple %v177
    %s179 = scalar_lea.vmem [#allocation0], 152
    %180 = vst [vmem:[%s179] sm:$0xff] %v177
    %s181 = scalar_lea.vmem %s0, 48
    %v182 = vld [vmem:[%s181] sm:$0xff]
    %s183 = scalar_lea.vmem %s1, 48
    %v184 = vld [vmem:[%s183] sm:$0xff]
    %185 = xla_tuple %v182, %v184
    %186 = xla_tuple %185
    %v187 = vsub.f32 %v182, %v184
    %188 = xla_tuple %v187
    %s189 = scalar_lea.vmem [#allocation0], 48
    %190 = vst [vmem:[%s189] sm:$0xff] %v187
    %s191 = scalar_lea.vmem %s0, 104
    %v192 = vld [vmem:[%s191] sm:$0xff]
    %s193 = scalar_lea.vmem %s1, 104
    %v194 = vld [vmem:[%s193] sm:$0xff]
    %195 = xla_tuple %v192, %v194
    %196 = xla_tuple %195
    %v197 = vsub.f32 %v192, %v194
    %198 = xla_tuple %v197
    %s199 = scalar_lea.vmem [#allocation0], 104
    %200 = vst [vmem:[%s199] sm:$0xff] %v197
    %s201 = scalar_lea.vmem %s0, 160
    %v202 = vld [vmem:[%s201] sm:$0xff]
    %s203 = scalar_lea.vmem %s1, 160
    %v204 = vld [vmem:[%s203] sm:$0xff]
    %205 = xla_tuple %v202, %v204
    %206 = xla_tuple %205
    %v207 = vsub.f32 %v202, %v204
    %208 = xla_tuple %v207
    %s209 = scalar_lea.vmem [#allocation0], 160
    %210 = vst [vmem:[%s209] sm:$0xff] %v207
    %s212 = ssub.s32 2688, 2688
    %213 = vsyncadd [#allocation1], %s212
    %s214 = sshll.u32 [#allocation0], 4
    %s215 = int_to_ptr.vmem [resolvable:$true] %s214
    %220 = dma.vmem_to_hbm [thread:$0]  %s215, 2688, %s2, [#allocation1], 896, 896, 56
    %221 = dma.done [#allocation1], 2688
    %222 = vsyncpa [#allocation1], 1

// kernel: mano_adaptor_forward.1
$region0: #{mano_adaptor_forward.1}
  #allocation0 [shape = 'u32[]', space=smem, size = 0x4, offset = 0x4, fixed_abs, tag = 'smem constant byte address 0x4 - core index']
  #allocation1 [shape = 'u32[144,128]{1,0:T(1,128)}', space=vmem, size = 0x12000, scoped, tag = 'internal scratch']
  %s0 = inlined_call_operand.vmem [shape: f32[21,778], index: 0, kind: input, shape index: {}]
  %s1 = inlined_call_operand.vmem [shape: f32[128,778], index: 1, kind: input, shape index: {}]
  %s2 = inlined_call_operand.vmem [shape: f32[21,128], index: 2, kind: output, shape index: {}]
  %s3 = sld [smem:[#allocation0]]
  $region18: #{mano_adaptor_forward.1} parent=0
    _
  %s5 = ssub.s32 1, %s3
  %s6 = scalar_select 0, %s5, %s3
  // Predicated region
  $region2: #{mano_adaptor_forward.1} parent=0 // pred_check
    _
  $region3: #{mano_adaptor_forward.1} parent=0 // pred_check_branch
    %8 = sbr.rel (0) target = $region5
  $region4: #{mano_adaptor_forward.1} parent=0 // pred_region
    _
  $region5: #{mano_adaptor_forward.1} parent=0 // pred_fallthru
    _
  // Predicated region
  $region6: #{mano_adaptor_forward.1} parent=0 // pred_check
    _
  $region7: #{mano_adaptor_forward.1} parent=0 // pred_check_branch
    %10 = sbr.rel (0) target = $region9
  $region8: #{mano_adaptor_forward.1} parent=0 // pred_region
    _
  $region9: #{mano_adaptor_forward.1} parent=0 // pred_fallthru
    _
  %v11 = vld [vmem:[%s0] sm:$0xff]
  %v12 = vld [vmem:[%s0 + $0x8] sm:$0xff]
  %v13 = vld [vmem:[%s0 + $0x10] sm:$0xff]
  %v14 = vld [vmem:[%s0 + $0x18] sm:$0xff]
  %v15 = vld [vmem:[%s0 + $0x20] sm:$0xff]
  %v16 = vld [vmem:[%s0 + $0x28] sm:$0xff]
  %v17 = vld [vmem:[%s0 + $0x30] sm:$0xff]
  %v18 = vld [vmem:[%s0 + $0x38] sm:$0xff]
  %v19 = vld [vmem:[%s0 + $0x40] sm:$0xff]
  %v20 = vld [vmem:[%s0 + $0x48] sm:$0xff]
  %v21 = vld [vmem:[%s0 + $0x50] sm:$0xff]
  %v22 = vld [vmem:[%s0 + $0x58] sm:$0xff]
  %v23 = vld [vmem:[%s0 + $0x60] sm:$0xff]
  %v24 = vld [vmem:[%s0 + $0x68] sm:$0xff]
  %v25 = vld [vmem:[%s0 + $0x70] sm:$0x1f]
  %v26 = vld [vmem:[%s0 + $0x78] sm:$0x1f]
  %v27 = vld [vmem:[%s0 + $0x80] sm:$0x1f]
  %v28 = vld [vmem:[%s0 + $0x88] sm:$0x1f]
  %v29 = vld [vmem:[%s0 + $0x90] sm:$0x1f]
  %v30 = vld [vmem:[%s0 + $0x98] sm:$0x1f]
  %v31 = vld [vmem:[%s0 + $0xa0] sm:$0x1f]
  %v32 = vld [vmem:[%s1] sm:$0xff]
  %v33 = vld [vmem:[%s1 + $0x8] sm:$0xff]
  %v34 = vld [vmem:[%s1 + $0x10] sm:$0xff]
  %v35 = vld [vmem:[%s1 + $0x18] sm:$0xff]
  %v36 = vld [vmem:[%s1 + $0x20] sm:$0xff]
  %v37 = vld [vmem:[%s1 + $0x28] sm:$0xff]
  %v38 = vld [vmem:[%s1 + $0x30] sm:$0xff]
  %v39 = vld [vmem:[%s1 + $0x38] sm:$0xff]
  %v40 = vld [vmem:[%s1 + $0x40] sm:$0xff]
  %v41 = vld [vmem:[%s1 + $0x48] sm:$0xff]
  %v42 = vld [vmem:[%s1 + $0x50] sm:$0xff]
  %v43 = vld [vmem:[%s1 + $0x58] sm:$0xff]
  %v44 = vld [vmem:[%s1 + $0x60] sm:$0xff]
  %v45 = vld [vmem:[%s1 + $0x68] sm:$0xff]
  %v46 = vld [vmem:[%s1 + $0x70] sm:$0xff]
  %v47 = vld [vmem:[%s1 + $0x78] sm:$0xff]
  %v48 = vld [vmem:[%s1 + $0x80] sm:$0xff]
  %v49 = vld [vmem:[%s1 + $0x88] sm:$0xff]
  %v50 = vld [vmem:[%s1 + $0x90] sm:$0xff]
  %v51 = vld [vmem:[%s1 + $0x98] sm:$0xff]
  %v52 = vld [vmem:[%s1 + $0xa0] sm:$0xff]
  %v53 = vld [vmem:[%s1 + $0xa8] sm:$0xff]
  %v54 = vld [vmem:[%s1 + $0xb0] sm:$0xff]
  %v55 = vld [vmem:[%s1 + $0xb8] sm:$0xff]
  %v56 = vld [vmem:[%s1 + $0xc0] sm:$0xff]
  %v57 = vld [vmem:[%s1 + $0xc8] sm:$0xff]
  %v58 = vld [vmem:[%s1 + $0xd0] sm:$0xff]
  %v59 = vld [vmem:[%s1 + $0xd8] sm:$0xff]
  %v60 = vld [vmem:[%s1 + $0xe0] sm:$0xff]
  %v61 = vld [vmem:[%s1 + $0xe8] sm:$0xff]
  %v62 = vld [vmem:[%s1 + $0xf0] sm:$0xff]
  %v63 = vld [vmem:[%s1 + $0xf8] sm:$0xff]
  %v64 = vld [vmem:[%s1 + $0x100] sm:$0xff]
  %v65 = vld [vmem:[%s1 + $0x108] sm:$0xff]
  %v66 = vld [vmem:[%s1 + $0x110] sm:$0xff]
  %v67 = vld [vmem:[%s1 + $0x118] sm:$0xff]
  %v68 = vld [vmem:[%s1 + $0x120] sm:$0xff]
  %v69 = vld [vmem:[%s1 + $0x128] sm:$0xff]
  %v70 = vld [vmem:[%s1 + $0x130] sm:$0xff]
  %v71 = vld [vmem:[%s1 + $0x138] sm:$0xff]
  %v72 = vld [vmem:[%s1 + $0x140] sm:$0xff]
  %v73 = vld [vmem:[%s1 + $0x148] sm:$0xff]
  %v74 = vld [vmem:[%s1 + $0x150] sm:$0xff]
  %v75 = vld [vmem:[%s1 + $0x158] sm:$0xff]
  %v76 = vld [vmem:[%s1 + $0x160] sm:$0xff]
  %v77 = vld [vmem:[%s1 + $0x168] sm:$0xff]
  %v78 = vld [vmem:[%s1 + $0x170] sm:$0xff]
  %v79 = vld [vmem:[%s1 + $0x178] sm:$0xff]
  %v80 = vld [vmem:[%s1 + $0x180] sm:$0xff]
  %v81 = vld [vmem:[%s1 + $0x188] sm:$0xff]
  %v82 = vld [vmem:[%s1 + $0x190] sm:$0xff]
  %v83 = vld [vmem:[%s1 + $0x198] sm:$0xff]
  %v84 = vld [vmem:[%s1 + $0x1a0] sm:$0xff]
  %v85 = vld [vmem:[%s1 + $0x1a8] sm:$0xff]
  %v86 = vld [vmem:[%s1 + $0x1b0] sm:$0xff]
  %v87 = vld [vmem:[%s1 + $0x1b8] sm:$0xff]
  %v88 = vld [vmem:[%s1 + $0x1c0] sm:$0xff]
  %v89 = vld [vmem:[%s1 + $0x1c8] sm:$0xff]
  %v90 = vld [vmem:[%s1 + $0x1d0] sm:$0xff]
  %v91 = vld [vmem:[%s1 + $0x1d8] sm:$0xff]
  %v92 = vld [vmem:[%s1 + $0x1e0] sm:$0xff]
  %v93 = vld [vmem:[%s1 + $0x1e8] sm:$0xff]
  %v94 = vld [vmem:[%s1 + $0x1f0] sm:$0xff]
  %v95 = vld [vmem:[%s1 + $0x1f8] sm:$0xff]
  %v96 = vld [vmem:[%s1 + $0x200] sm:$0xff]
  %v97 = vld [vmem:[%s1 + $0x208] sm:$0xff]
  %v98 = vld [vmem:[%s1 + $0x210] sm:$0xff]
  %v99 = vld [vmem:[%s1 + $0x218] sm:$0xff]
  %v100 = vld [vmem:[%s1 + $0x220] sm:$0xff]
  %v101 = vld [vmem:[%s1 + $0x228] sm:$0xff]
  %v102 = vld [vmem:[%s1 + $0x230] sm:$0xff]
  %v103 = vld [vmem:[%s1 + $0x238] sm:$0xff]
  %v104 = vld [vmem:[%s1 + $0x240] sm:$0xff]
  %v105 = vld [vmem:[%s1 + $0x248] sm:$0xff]
  %v106 = vld [vmem:[%s1 + $0x250] sm:$0xff]
  %v107 = vld [vmem:[%s1 + $0x258] sm:$0xff]
  %v108 = vld [vmem:[%s1 + $0x260] sm:$0xff]
  %v109 = vld [vmem:[%s1 + $0x268] sm:$0xff]
  %v110 = vld [vmem:[%s1 + $0x270] sm:$0xff]
  %v111 = vld [vmem:[%s1 + $0x278] sm:$0xff]
  %v112 = vld [vmem:[%s1 + $0x280] sm:$0xff]
  %v113 = vld [vmem:[%s1 + $0x288] sm:$0xff]
  %v114 = vld [vmem:[%s1 + $0x290] sm:$0xff]
  %v115 = vld [vmem:[%s1 + $0x298] sm:$0xff]
  %v116 = vld [vmem:[%s1 + $0x2a0] sm:$0xff]
  %v117 = vld [vmem:[%s1 + $0x2a8] sm:$0xff]
  %v118 = vld [vmem:[%s1 + $0x2b0] sm:$0xff]
  %v119 = vld [vmem:[%s1 + $0x2b8] sm:$0xff]
  %v120 = vld [vmem:[%s1 + $0x2c0] sm:$0xff]
  %v121 = vld [vmem:[%s1 + $0x2c8] sm:$0xff]
  %v122 = vld [vmem:[%s1 + $0x2d0] sm:$0xff]
  %v123 = vld [vmem:[%s1 + $0x2d8] sm:$0xff]
  %v124 = vld [vmem:[%s1 + $0x2e0] sm:$0xff]
  %v125 = vld [vmem:[%s1 + $0x2e8] sm:$0xff]
  %v126 = vld [vmem:[%s1 + $0x2f0] sm:$0xff]
  %v127 = vld [vmem:[%s1 + $0x2f8] sm:$0xff]
  %v128 = vld [vmem:[%s1 + $0x300] sm:$0xff]
  %v129 = vld [vmem:[%s1 + $0x308] sm:$0xff]
  %v130 = vld [vmem:[%s1 + $0x310] sm:$0xff]
  %v131 = vld [vmem:[%s1 + $0x318] sm:$0xff]
  %v132 = vld [vmem:[%s1 + $0x320] sm:$0xff]
  %v133 = vld [vmem:[%s1 + $0x328] sm:$0xff]
  %v134 = vld [vmem:[%s1 + $0x330] sm:$0xff]
  %v135 = vld [vmem:[%s1 + $0x338] sm:$0xff]
  %v136 = vld [vmem:[%s1 + $0x340] sm:$0xff]
  %v137 = vld [vmem:[%s1 + $0x348] sm:$0xff]
  %v138 = vld [vmem:[%s1 + $0x350] sm:$0xff]
  %v139 = vld [vmem:[%s1 + $0x358] sm:$0xff]
  %v140 = vld [vmem:[%s1 + $0x360] sm:$0xff]
  %v141 = vld [vmem:[%s1 + $0x368] sm:$0xff]
  %v142 = vld [vmem:[%s1 + $0x370] sm:$0xff]
  %v143 = vld [vmem:[%s1 + $0x378] sm:$0xff]
  %vm144 = vcmask 80896
  %v146 = vsel %vm144, %v17, 0
  %v149 = vsel %vm144, %v24, 0
  %v152 = vsel %vm144, %v31, 0
  %v155 = vsel %vm144, %v38, 0
  %v158 = vsel %vm144, %v45, 0
  %v161 = vsel %vm144, %v52, 0
  %v164 = vsel %vm144, %v59, 0
  %v167 = vsel %vm144, %v66, 0
  %v170 = vsel %vm144, %v73, 0
  %v173 = vsel %vm144, %v80, 0
  %v176 = vsel %vm144, %v87, 0
  %v179 = vsel %vm144, %v94, 0
  %v182 = vsel %vm144, %v101, 0
  %v185 = vsel %vm144, %v108, 0
  %v188 = vsel %vm144, %v115, 0
  %v191 = vsel %vm144, %v122, 0
  %v194 = vsel %vm144, %v129, 0
  %v197 = vsel %vm144, %v136, 0
  %v200 = vsel %vm144, %v143, 0
  %202 = vmatprep.subr.mxu0 %v33
  %203 = vmatpush1.xpose.msra.mxu0 %v32
  %204 = vmatprep.subr.mxu0 %v40
  %205 = vmatpush1.xpose.msra.mxu0 %v39
  %206 = vmatprep.subr.mxu0 %v47
  %207 = vmatpush1.xpose.msra.mxu0 %v46
  %208 = vmatprep.subr.mxu0 %v54
  %209 = vmatpush1.xpose.msra.mxu0 %v53
  %210 = vmatprep.subr.mxu0 %v61
  %211 = vmatpush1.xpose.msra.mxu0 %v60
  %212 = vmatprep.subr.mxu0 %v68
  %213 = vmatpush1.xpose.msra.mxu0 %v67
  %214 = vmatprep.subr.mxu0 %v75
  %215 = vmatpush1.xpose.msra.mxu0 %v74
  %216 = vmatprep.subr.mxu0 %v82
  %217 = vmatpush1.xpose.msra.mxu0 %v81
  %218 = vmatprep.subr.mxu0 %v89
  %219 = vmatpush1.xpose.msra.mxu0 %v88
  %220 = vmatprep.subr.mxu0 %v96
  %221 = vmatpush1.xpose.msra.mxu0 %v95
  %222 = vmatprep.subr.mxu0 %v103
  %223 = vmatpush1.xpose.msra.mxu0 %v102
  %224 = vmatprep.subr.mxu0 %v110
  %225 = vmatpush1.xpose.msra.mxu0 %v109
  %226 = vmatprep.subr.mxu0 %v117
  %227 = vmatpush1.xpose.msra.mxu0 %v116
  %228 = vmatprep.subr.mxu0 %v124
  %229 = vmatpush1.xpose.msra.mxu0 %v123
  %230 = vmatprep.subr.mxu0 %v131
  %231 = vmatpush1.xpose.msra.mxu0 %v130
  %232 = vmatprep.subr.mxu0 %v138
  %233 = vmatpush1.xpose.msra.mxu0 %v137
  %234 = vmatprep.subr.mxu0 0.0
  %235 = vmatpush1.xpose.msra.mxu0 0.0
  %236 = vmatprep.subr.mxu0 0.0
  %237 = vmatpush1.xpose.msra.mxu0 0.0
  %238 = vmatprep.subr.mxu0 0.0
  %239 = vmatpush1.xpose.msra.mxu0 0.0
  %240 = vmatprep.subr.mxu0 0.0
  %241 = vmatpush1.xpose.msra.mxu0 0.0
  %242 = vmatprep.subr.mxu0 0.0
  %243 = vmatpush1.xpose.msra.mxu0 0.0
  %244 = vmatprep.subr.mxu0 0.0
  %245 = vmatpush1.xpose.msra.mxu0 0.0
  %246 = vmatprep.subr.mxu0 0.0
  %247 = vmatpush1.xpose.msra.mxu0 0.0
  %248 = vmatprep.subr.mxu0 0.0
  %249 = vmatpush1.xpose.msra.mxu0 0.0
  %250 = vmatprep.subr.mxu0 0.0
  %251 = vmatpush1.xpose.msra.mxu0 0.0
  %252 = vmatprep.subr.mxu0 0.0
  %253 = vmatpush1.xpose.msra.mxu0 0.0
  %254 = vmatprep.subr.mxu0 0.0
  %255 = vmatpush1.xpose.msra.mxu0 0.0
  %256 = vmatprep.subr.mxu0 0.0
  %257 = vmatpush1.xpose.msra.mxu0 0.0
  %258 = vmatprep.subr.mxu0 0.0
  %259 = vmatpush1.xpose.msra.mxu0 0.0
  %260 = vmatprep.subr.mxu0 0.0
  %261 = vmatpush1.xpose.msra.mxu0 0.0
  %262 = vmatprep.subr.mxu0 0.0
  %263 = vmatpush1.xpose.msra.mxu0 0.0
  %264 = vmatprep.subr.mxu0 0.0
  %265 = vmatpush1.xpose.msra.mxu0 0.0
  %266 = vmatprep.mubr.f32.mxu0 %v12
  %267 = vmatmul.mubr.f32.gmra.mrb[0].mxu0 %v11
  %v268 = vpop.f32.mrb[0].mxu0
  %v269 = vadd.f32 0.0, %v268
  %v270 = vpop.f32.mrb[0].mxu0
  %271 = vmatprep.mubr.f32.mxu0 %v19
  %272 = vmatmul.mubr.f32.gmra.mrb[0].mxu0 %v18
  %v273 = vpop.f32.mrb[0].mxu0
  %v274 = vadd.f32 0.0, %v273
  %v275 = vpop.f32.mrb[0].mxu0
  %276 = vmatprep.mubr.f32.mxu0 %v26
  %277 = vmatmul.mubr.f32.gmra.mrb[0].mxu0 %v25
  %v278 = vpop.f32.mrb[0].mxu0
  %v279 = vadd.f32 0.0, %v278
  %v280 = vpop.f32.mrb[0].mxu0
  %281 = vdwg.mxu0
  %282 = vmatprep.subr.mxu0 %v35
  %283 = vmatpush1.xpose.msra.mxu0 %v34
  %284 = vmatprep.subr.mxu0 %v42
  %285 = vmatpush1.xpose.msra.mxu0 %v41
  %286 = vmatprep.subr.mxu0 %v49
  %287 = vmatpush1.xpose.msra.mxu0 %v48
  %288 = vmatprep.subr.mxu0 %v56
  %289 = vmatpush1.xpose.msra.mxu0 %v55
  %290 = vmatprep.subr.mxu0 %v63
  %291 = vmatpush1.xpose.msra.mxu0 %v62
  %292 = vmatprep.subr.mxu0 %v70
  %293 = vmatpush1.xpose.msra.mxu0 %v69
  %294 = vmatprep.subr.mxu0 %v77
  %295 = vmatpush1.xpose.msra.mxu0 %v76
  %296 = vmatprep.subr.mxu0 %v84
  %297 = vmatpush1.xpose.msra.mxu0 %v83
  %298 = vmatprep.subr.mxu0 %v91
  %299 = vmatpush1.xpose.msra.mxu0 %v90
  %300 = vmatprep.subr.mxu0 %v98
  %301 = vmatpush1.xpose.msra.mxu0 %v97
  %302 = vmatprep.subr.mxu0 %v105
  %303 = vmatpush1.xpose.msra.mxu0 %v104
  %304 = vmatprep.subr.mxu0 %v112
  %305 = vmatpush1.xpose.msra.mxu0 %v111
  %306 = vmatprep.subr.mxu0 %v119
  %307 = vmatpush1.xpose.msra.mxu0 %v118
  %308 = vmatprep.subr.mxu0 %v126
  %309 = vmatpush1.xpose.msra.mxu0 %v125
  %310 = vmatprep.subr.mxu0 %v133
  %311 = vmatpush1.xpose.msra.mxu0 %v132
  %312 = vmatprep.subr.mxu0 %v140
  %313 = vmatpush1.xpose.msra.mxu0 %v139
  %314 = vmatprep.subr.mxu0 0.0
  %315 = vmatpush1.xpose.msra.mxu0 0.0
  %316 = vmatprep.subr.mxu0 0.0
  %317 = vmatpush1.xpose.msra.mxu0 0.0
  %318 = vmatprep.subr.mxu0 0.0
  %319 = vmatpush1.xpose.msra.mxu0 0.0
  %320 = vmatprep.subr.mxu0 0.0
  %321 = vmatpush1.xpose.msra.mxu0 0.0
  %322 = vmatprep.subr.mxu0 0.0
  %323 = vmatpush1.xpose.msra.mxu0 0.0
  %324 = vmatprep.subr.mxu0 0.0
  %325 = vmatpush1.xpose.msra.mxu0 0.0
  %326 = vmatprep.subr.mxu0 0.0
  %327 = vmatpush1.xpose.msra.mxu0 0.0
  %328 = vmatprep.subr.mxu0 0.0
  %329 = vmatpush1.xpose.msra.mxu0 0.0
  %330 = vmatprep.subr.mxu0 0.0
  %331 = vmatpush1.xpose.msra.mxu0 0.0
  %332 = vmatprep.subr.mxu0 0.0
  %333 = vmatpush1.xpose.msra.mxu0 0.0
  %334 = vmatprep.subr.mxu0 0.0
  %335 = vmatpush1.xpose.msra.mxu0 0.0
  %336 = vmatprep.subr.mxu0 0.0
  %337 = vmatpush1.xpose.msra.mxu0 0.0
  %338 = vmatprep.subr.mxu0 0.0
  %339 = vmatpush1.xpose.msra.mxu0 0.0
  %340 = vmatprep.subr.mxu0 0.0
  %341 = vmatpush1.xpose.msra.mxu0 0.0
  %342 = vmatprep.subr.mxu0 0.0
  %343 = vmatpush1.xpose.msra.mxu0 0.0
  %344 = vmatprep.subr.mxu0 0.0
  %345 = vmatpush1.xpose.msra.mxu0 0.0
  %346 = vmatprep.mubr.f32.mxu0 %v14
  %347 = vmatmul.mubr.f32.gmra.mrb[0].mxu0 %v13
  %v348 = vpop.f32.mrb[0].mxu0
  %v349 = vadd.f32 %v269, %v348
  %v350 = vpop.f32.mrb[0].mxu0
  %351 = vmatprep.mubr.f32.mxu0 %v21
  %352 = vmatmul.mubr.f32.gmra.mrb[0].mxu0 %v20
  %v353 = vpop.f32.mrb[0].mxu0
  %v354 = vadd.f32 %v274, %v353
  %v355 = vpop.f32.mrb[0].mxu0
  %356 = vmatprep.mubr.f32.mxu0 %v28
  %357 = vmatmul.mubr.f32.gmra.mrb[0].mxu0 %v27
  %v358 = vpop.f32.mrb[0].mxu0
  %v359 = vadd.f32 %v279, %v358
  %v360 = vpop.f32.mrb[0].mxu0
  %361 = vdwg.mxu0
  %362 = vmatprep.subr.mxu0 %v37
  %363 = vmatpush1.xpose.msra.mxu0 %v36
  %364 = vmatprep.subr.mxu0 %v44
  %365 = vmatpush1.xpose.msra.mxu0 %v43
  %366 = vmatprep.subr.mxu0 %v51
  %367 = vmatpush1.xpose.msra.mxu0 %v50
  %368 = vmatprep.subr.mxu0 %v58
  %369 = vmatpush1.xpose.msra.mxu0 %v57
  %370 = vmatprep.subr.mxu0 %v65
  %371 = vmatpush1.xpose.msra.mxu0 %v64
  %372 = vmatprep.subr.mxu0 %v72
  %373 = vmatpush1.xpose.msra.mxu0 %v71
  %374 = vmatprep.subr.mxu0 %v79
  %375 = vmatpush1.xpose.msra.mxu0 %v78
  %376 = vmatprep.subr.mxu0 %v86
  %377 = vmatpush1.xpose.msra.mxu0 %v85
  %378 = vmatprep.subr.mxu0 %v93
  %379 = vmatpush1.xpose.msra.mxu0 %v92
  %380 = vmatprep.subr.mxu0 %v100
  %381 = vmatpush1.xpose.msra.mxu0 %v99
  %382 = vmatprep.subr.mxu0 %v107
  %383 = vmatpush1.xpose.msra.mxu0 %v106
  %384 = vmatprep.subr.mxu0 %v114
  %385 = vmatpush1.xpose.msra.mxu0 %v113
  %386 = vmatprep.subr.mxu0 %v121
  %387 = vmatpush1.xpose.msra.mxu0 %v120
  %388 = vmatprep.subr.mxu0 %v128
  %389 = vmatpush1.xpose.msra.mxu0 %v127
  %390 = vmatprep.subr.mxu0 %v135
  %391 = vmatpush1.xpose.msra.mxu0 %v134
  %392 = vmatprep.subr.mxu0 %v142
  %393 = vmatpush1.xpose.msra.mxu0 %v141
  %394 = vmatprep.subr.mxu0 0.0
  %395 = vmatpush1.xpose.msra.mxu0 0.0
  %396 = vmatprep.subr.mxu0 0.0
  %397 = vmatpush1.xpose.msra.mxu0 0.0
  %398 = vmatprep.subr.mxu0 0.0
  %399 = vmatpush1.xpose.msra.mxu0 0.0
  %400 = vmatprep.subr.mxu0 0.0
  %401 = vmatpush1.xpose.msra.mxu0 0.0
  %402 = vmatprep.subr.mxu0 0.0
  %403 = vmatpush1.xpose.msra.mxu0 0.0
  %404 = vmatprep.subr.mxu0 0.0
  %405 = vmatpush1.xpose.msra.mxu0 0.0
  %406 = vmatprep.subr.mxu0 0.0
  %407 = vmatpush1.xpose.msra.mxu0 0.0
  %408 = vmatprep.subr.mxu0 0.0
  %409 = vmatpush1.xpose.msra.mxu0 0.0
  %410 = vmatprep.subr.mxu0 0.0
  %411 = vmatpush1.xpose.msra.mxu0 0.0
  %412 = vmatprep.subr.mxu0 0.0
  %413 = vmatpush1.xpose.msra.mxu0 0.0
  %414 = vmatprep.subr.mxu0 0.0
  %415 = vmatpush1.xpose.msra.mxu0 0.0
  %416 = vmatprep.subr.mxu0 0.0
  %417 = vmatpush1.xpose.msra.mxu0 0.0
  %418 = vmatprep.subr.mxu0 0.0
  %419 = vmatpush1.xpose.msra.mxu0 0.0
  %420 = vmatprep.subr.mxu0 0.0
  %421 = vmatpush1.xpose.msra.mxu0 0.0
  %422 = vmatprep.subr.mxu0 0.0
  %423 = vmatpush1.xpose.msra.mxu0 0.0
  %424 = vmatprep.subr.mxu0 0.0
  %425 = vmatpush1.xpose.msra.mxu0 0.0
  %426 = vmatprep.mubr.f32.mxu0 %v16
  %427 = vmatmul.mubr.f32.gmra.mrb[0].mxu0 %v15
  %v428 = vpop.f32.mrb[0].mxu0
  %v429 = vadd.f32 %v349, %v428
  %v430 = vpop.f32.mrb[0].mxu0
  %431 = vmatprep.mubr.f32.mxu0 %v23
  %432 = vmatmul.mubr.f32.gmra.mrb[0].mxu0 %v22
  %v433 = vpop.f32.mrb[0].mxu0
  %v434 = vadd.f32 %v354, %v433
  %v435 = vpop.f32.mrb[0].mxu0
  %436 = vmatprep.mubr.f32.mxu0 %v30
  %437 = vmatmul.mubr.f32.gmra.mrb[0].mxu0 %v29
  %v438 = vpop.f32.mrb[0].mxu0
  %v439 = vadd.f32 %v359, %v438
  %v440 = vpop.f32.mrb[0].mxu0
  %441 = vdwg.mxu0
  %442 = vmatprep.subr.mxu0 0.0
  %443 = vmatpush1.xpose.msra.mxu0 %v155
  %444 = vmatprep.subr.mxu0 0.0
  %445 = vmatpush1.xpose.msra.mxu0 %v158
  %446 = vmatprep.subr.mxu0 0.0
  %447 = vmatpush1.xpose.msra.mxu0 %v161
  %448 = vmatprep.subr.mxu0 0.0
  %449 = vmatpush1.xpose.msra.mxu0 %v164
  %450 = vmatprep.subr.mxu0 0.0
  %451 = vmatpush1.xpose.msra.mxu0 %v167
  %452 = vmatprep.subr.mxu0 0.0
  %453 = vmatpush1.xpose.msra.mxu0 %v170
  %454 = vmatprep.subr.mxu0 0.0
  %455 = vmatpush1.xpose.msra.mxu0 %v173
  %456 = vmatprep.subr.mxu0 0.0
  %457 = vmatpush1.xpose.msra.mxu0 %v176
  %458 = vmatprep.subr.mxu0 0.0
  %459 = vmatpush1.xpose.msra.mxu0 %v179
  %460 = vmatprep.subr.mxu0 0.0
  %461 = vmatpush1.xpose.msra.mxu0 %v182
  %462 = vmatprep.subr.mxu0 0.0
  %463 = vmatpush1.xpose.msra.mxu0 %v185
  %464 = vmatprep.subr.mxu0 0.0
  %465 = vmatpush1.xpose.msra.mxu0 %v188
  %466 = vmatprep.subr.mxu0 0.0
  %467 = vmatpush1.xpose.msra.mxu0 %v191
  %468 = vmatprep.subr.mxu0 0.0
  %469 = vmatpush1.xpose.msra.mxu0 %v194
  %470 = vmatprep.subr.mxu0 0.0
  %471 = vmatpush1.xpose.msra.mxu0 %v197
  %472 = vmatprep.subr.mxu0 0.0
  %473 = vmatpush1.xpose.msra.mxu0 %v200
  %474 = vmatprep.subr.mxu0 0.0
  %475 = vmatpush1.xpose.msra.mxu0 0.0
  %476 = vmatprep.subr.mxu0 0.0
  %477 = vmatpush1.xpose.msra.mxu0 0.0
  %478 = vmatprep.subr.mxu0 0.0
  %479 = vmatpush1.xpose.msra.mxu0 0.0
  %480 = vmatprep.subr.mxu0 0.0
  %481 = vmatpush1.xpose.msra.mxu0 0.0
  %482 = vmatprep.subr.mxu0 0.0
  %483 = vmatpush1.xpose.msra.mxu0 0.0
  %484 = vmatprep.subr.mxu0 0.0
  %485 = vmatpush1.xpose.msra.mxu0 0.0
  %486 = vmatprep.subr.mxu0 0.0
  %487 = vmatpush1.xpose.msra.mxu0 0.0
  %488 = vmatprep.subr.mxu0 0.0
  %489 = vmatpush1.xpose.msra.mxu0 0.0
  %490 = vmatprep.subr.mxu0 0.0
  %491 = vmatpush1.xpose.msra.mxu0 0.0
  %492 = vmatprep.subr.mxu0 0.0
  %493 = vmatpush1.xpose.msra.mxu0 0.0
  %494 = vmatprep.subr.mxu0 0.0
  %495 = vmatpush1.xpose.msra.mxu0 0.0
  %496 = vmatprep.subr.mxu0 0.0
  %497 = vmatpush1.xpose.msra.mxu0 0.0
  %498 = vmatprep.subr.mxu0 0.0
  %499 = vmatpush1.xpose.msra.mxu0 0.0
  %500 = vmatprep.subr.mxu0 0.0
  %501 = vmatpush1.xpose.msra.mxu0 0.0
  %502 = vmatprep.subr.mxu0 0.0
  %503 = vmatpush1.xpose.msra.mxu0 0.0
  %504 = vmatprep.subr.mxu0 0.0
  %505 = vmatpush1.xpose.msra.mxu0 0.0
  %506 = vmatprep.mubr.f32.mxu0 0.0
  %507 = vmatmul.mubr.f32.gmra.mrb[0].mxu0 %v146
  %v508 = vpop.f32.mrb[0].mxu0
  %v509 = vadd.f32 %v429, %v508
  %v510 = vpop.f32.mrb[0].mxu0
  %511 = vmatprep.mubr.f32.mxu0 0.0
  %512 = vmatmul.mubr.f32.gmra.mrb[0].mxu0 %v149
  %v513 = vpop.f32.mrb[0].mxu0
  %v514 = vadd.f32 %v434, %v513
  %v515 = vpop.f32.mrb[0].mxu0
  %516 = vmatprep.mubr.f32.mxu0 0.0
  %517 = vmatmul.mubr.f32.gmra.mrb[0].mxu0 %v152
  %v518 = vpop.f32.mrb[0].mxu0
  %v519 = vadd.f32 %v439, %v518
  %v520 = vpop.f32.mrb[0].mxu0
  %521 = vdwg.mxu0
  %522 = vst [vmem:[%s2] sm:$0xff] %v509
  %523 = vst [vmem:[%s2 + $0x8] sm:$0xff] %v514
  %524 = vst [vmem:[%s2 + $0x10] sm:$0x1f] %v519
  // Predicated region
  $region10: #{mano_adaptor_forward.1} parent=0 // pred_check
    _
  $region11: #{mano_adaptor_forward.1} parent=0 // pred_check_branch
    %526 = sbr.rel (0) target = $region13
  $region12: #{mano_adaptor_forward.1} parent=0 // pred_region
    _
  $region13: #{mano_adaptor_forward.1} parent=0 // pred_fallthru
    _
  // Predicated region
  $region14: #{mano_adaptor_forward.1} parent=0 // pred_check
    _
  $region15: #{mano_adaptor_forward.1} parent=0 // pred_check_branch
    %528 = sbr.rel (0) target = $region17
  $region16: #{mano_adaptor_forward.1} parent=0 // pred_region
    _
  $region17: #{mano_adaptor_forward.1} parent=0 // pred_fallthru
    _

</llo_original>
